<compile_context>
chip_gen: v5e
topology: v5e:2x2
jax: 0.10.0
libtpu: 0.0.40
codegen_flags: <defaults>
</compile_context>

<pallas_src>
import functools

import jax
import jax.numpy as jnp
import numpy as np
from jax.experimental import pallas as pl
from jax.experimental.pallas import tpu as pltpu

TEMPERATURE = 1.5  # kwargs['temperature']


def _round_up(x, m):
    return ((x + m - 1) // m) * m


def _tensorcores_per_chip():
    """2 TensorCores per chip on v7x (and megacore v4/v5p); 1 on v5e/v6e."""
    try:
        kind = (jax.devices()[0].device_kind or "").lower()
    except Exception:  # unknown backend metadata -> conservative default
        return 1
    return 2 if any(tag in kind for tag in ("7x", "v7", "v4", "v5p")) else 1


def _choose_tile(b_pad, n_cores):
    """Batch tile: one big grid step on 1-TC chips; two equal steps on 2-TC chips."""
    if n_cores >= 2 and b_pad >= 32:
        # Two equal halves so both TensorCores get the same work, aligned to the
        # bf16 sublane packing (16 rows).  Cap at 512-row MXU tiles for big batches.
        return min(512, _round_up(pl.cdiv(b_pad, 2), 16))
    # Single TensorCore: the grid is a sequential loop, so one big step is best.
    return min(1024, b_pad)


def _mf_actor_kernel(obs_ref, ids_ref,
                     w_rep_ref, b_rep_ref,
                     w1s_ref, w1i_ref, b1_ref,
                     w2_ref, b2_ref,
                     logits_ref, probs_ref):
    f32 = jnp.float32
    cdt = w1s_ref.dtype  # MXU operand dtype (bf16 by default); accumulation stays f32

    # actor_representation (Basic_MLP): state = ReLU(obs @ W_rep + b_rep)
    state = jnp.dot(obs_ref[...], w_rep_ref[...], preferred_element_type=f32)
    state = jnp.maximum(state + b_rep_ref[...], 0.0).astype(cdt)

    # ActorNet hidden layer on concat([state, agent_ids]) -> split into two matmuls
    h1 = (jnp.dot(state, w1s_ref[...], preferred_element_type=f32)
          + jnp.dot(ids_ref[...], w1i_ref[...], preferred_element_type=f32)
          + b1_ref[...])
    h1 = jnp.maximum(h1, 0.0).astype(w2_ref.dtype)

    # ActorNet output layer (no final activation).
    logits = jnp.dot(h1, w2_ref[...], preferred_element_type=f32) + b2_ref[...]

    # get_boltzmann_policy: numerically stable softmax(logits / temperature).
    x = logits * (1.0 / TEMPERATURE)
    m = jnp.max(x, axis=-1, keepdims=True)
    e = jnp.exp(x - m)
    probs = e * pl.reciprocal(jnp.sum(e, axis=-1, keepdims=True), approx=True)

    logits_ref[...] = logits
    probs_ref[...] = probs


def prepare_params(params, compute_dtype=jnp.bfloat16):
    """One-time weight preparation: MXU operands in compute_dtype, biases kept f32.

    bf16 intermediates introduce ~1e-2-scale error on logits — acceptable for policy
    sampling; pass compute_dtype=jnp.float32 for exact parity with the reference.
    """
    cdt = compute_dtype
    f32 = jnp.float32
    return {
        "w_rep":    params["w_rep"].astype(cdt),
        "b_rep":    params["b_rep"].astype(f32).reshape(1, -1),
        "w1_state": params["w1_state"].astype(cdt),
        "w1_ids":   params["w1_ids"].astype(cdt),
        "b1":       params["b1"].astype(f32).reshape(1, -1),
        "w2":       params["w2"].astype(cdt),
        "b2":       params["b2"].astype(f32).reshape(1, -1),
    }


@functools.partial(jax.jit, static_argnames=("tb",))
def _mf_actor_call(obs, agent_ids, prep, *, tb):
    B, d_obs = obs.shape
    _, n_agents = agent_ids.shape
    d_rep = prep["w_rep"].shape[1]
    d_h = prep["w1_state"].shape[1]
    n_act = prep["w2"].shape[1]
    cdt = prep["w_rep"].dtype

    obs_c = obs.astype(cdt)
    ids_c = agent_ids.astype(cdt)
    B_pad = _round_up(B, tb)
    if B_pad != B:
        obs_c = jnp.pad(obs_c, ((0, B_pad - B), (0, 0)))
        ids_c = jnp.pad(ids_c, ((0, B_pad - B), (0, 0)))
    grid = (B_pad // tb,)

    # Replicated weights: constant index_map -> DMA'd once, resident across the grid.
    rep = lambda shape: pl.BlockSpec(shape, lambda i: (0, 0))
    weights = (prep["w_rep"], prep["b_rep"], prep["w1_state"], prep["w1_ids"],
               prep["b1"], prep["w2"], prep["b2"])

    nbytes = lambda a: a.size * a.dtype.itemsize
    cost = pl.CostEstimate(
        flops=2 * B_pad * (d_obs * d_rep + d_rep * d_h + n_agents * d_h + d_h * n_act),
        transcendentals=B_pad * n_act,
        bytes_accessed=int(nbytes(obs_c) + nbytes(ids_c)
                           + sum(nbytes(w) for w in weights)
                           + 2 * B_pad * n_act * 4),
    )

    logits, probs = pl.pallas_call(
        _mf_actor_kernel,
        out_shape=(jax.ShapeDtypeStruct((B_pad, n_act), jnp.float32),
                   jax.ShapeDtypeStruct((B_pad, n_act), jnp.float32)),
        grid_spec=pltpu.PrefetchScalarGridSpec(
            num_scalar_prefetch=0,
            grid=grid,
            in_specs=[
                pl.BlockSpec((tb, d_obs), lambda i: (i, 0)),        # obs tile
                pl.BlockSpec((tb, n_agents), lambda i: (i, 0)),     # agent_ids tile
                rep((d_obs, d_rep)), rep((1, d_rep)),               # representation
                rep((d_rep, d_h)), rep((n_agents, d_h)), rep((1, d_h)),  # actor hidden
                rep((d_h, n_act)), rep((1, n_act)),                 # actor output layer
            ],
            out_specs=(pl.BlockSpec((tb, n_act), lambda i: (i, 0)),   # logits
                       pl.BlockSpec((tb, n_act), lambda i: (i, 0))),  # probs
        ),
        compiler_params=pltpu.CompilerParams(
            dimension_semantics=("parallel",)),
        cost_estimate=cost,
    )(obs_c, ids_c, *weights)

    if B_pad != B:
        logits, probs = logits[:B], probs[:B]
    return logits, probs


def mf_actor_forward(obs, agent_ids, prep, *, tb=None):
    """Fused actor forward.  obs: [B, D_obs] f32, agent_ids: [B, n_agents] f32 (one-hot).
    Returns (logits [B, n_act] f32, probs [B, n_act] f32)."""
    B = obs.shape[0]
    if tb is None:
        sub = 16 if jnp.dtype(prep["w_rep"].dtype).itemsize < 4 else 8
        tb = _choose_tile(_round_up(B, sub), _tensorcores_per_chip())
        tb = max(sub, _round_up(int(tb), sub))
    else:
        tb = max(8, _round_up(int(tb), 8))
    return _mf_actor_call(obs, agent_ids, prep, tb=int(tb))


def _reference(obs, agent_ids, params):
    state = jax.nn.relu(obs @ params["w_rep"] + params["b_rep"])
    actor_in = jnp.concatenate([state, agent_ids], axis=-1)
    w1 = jnp.concatenate([params["w1_state"], params["w1_ids"]], axis=0)
    h1 = jax.nn.relu(actor_in @ w1 + params["b1"])
    logits = h1 @ params["w2"] + params["b2"]
    probs = jax.nn.softmax(logits / TEMPERATURE, axis=-1)
    return logits, probs


if __name__ == "__main__":
    # Small shapes consistent with the module:
    #   n_agents=4, batch_env=4 => B = 16 flattened rows; obs_dim=32,
    #   representation state dim=64, actor_hidden_size=[64], n_actions=8,
    #   use_parameter_sharing=True, use_rnn=False, temperature=1.5.
    n_agents, batch_env = 4, 4
    B = n_agents * batch_env
    d_obs, d_rep, d_h, n_actions = 32, 64, 64, 8

    key = jax.random.PRNGKey(0)
    ks = jax.random.split(key, 9)
    scale = 0.1
    params = {
        "w_rep":    scale * jax.random.normal(ks[0], (d_obs, d_rep), jnp.float32),
        "b_rep":    scale * jax.random.normal(ks[1], (1, d_rep), jnp.float32),
        "w1_state": scale * jax.random.normal(ks[2], (d_rep, d_h), jnp.float32),
        "w1_ids":   scale * jax.random.normal(ks[3], (n_agents, d_h), jnp.float32),
        "b1":       scale * jax.random.normal(ks[4], (1, d_h), jnp.float32),
        "w2":       scale * jax.random.normal(ks[5], (d_h, n_actions), jnp.float32),
        "b2":       scale * jax.random.normal(ks[6], (1, n_actions), jnp.float32),
    }

    obs = jax.random.normal(ks[7], (B, d_obs), jnp.float32)
    agent_ids = jnp.tile(jnp.eye(n_agents, dtype=jnp.float32), (batch_env, 1))
    ref_logits, ref_probs = _reference(obs, agent_ids, params)

    # --- exact path (f32 MXU operands): tight tolerances ---
    prep_f32 = prepare_params(params, compute_dtype=jnp.float32)
    logits, probs = mf_actor_forward(obs, agent_ids, prep_f32)
    jax.block_until_ready((logits, probs))
    np.testing.assert_allclose(np.asarray(logits), np.asarray(ref_logits),
                               rtol=1e-5, atol=1e-5)
    np.testing.assert_allclose(np.asarray(probs), np.asarray(ref_probs),
                               rtol=5e-3, atol=2e-3)
    assert np.allclose(np.asarray(probs).sum(-1), 1.0, atol=5e-3)

    # --- default bf16 MXU path, non-tile-multiple batch (exercises padding / tiling) ---
    prep = prepare_params(params)  # bfloat16 operands (default)
    B2 = 25 * n_agents             # 100 rows -> padded to the chosen tile internally
    obs2 = jax.random.normal(ks[8], (B2, d_obs), jnp.float32)
    agent_ids2 = jnp.tile(jnp.eye(n_agents, dtype=jnp.float32), (25, 1))
    logits2, probs2 = mf_actor_forward(obs2, agent_ids2, prep)
    jax.block_until_ready((logits2, probs2))
    ref_logits2, ref_probs2 = _reference(obs2, agent_ids2, params)
    np.testing.assert_allclose(np.asarray(logits2), np.asarray(ref_logits2),
                               rtol=5e-2, atol=3e-2)
    np.testing.assert_allclose(np.asarray(probs2), np.asarray(ref_probs2),
                               rtol=5e-2, atol=2e-2)

    # TODO(synk): get_values()/get_mean_actions() (critic path with action-mean embedding)
    # are separate methods, not part of forward(); not implemented here.
    print("KERNEL_OK")
</pallas_src>

<mosaic_0001>
module attributes {stable_mosaic.version = 11 : i64} {
  func.func @_mf_actor_kernel(%arg0: i32, %arg1: memref<16x32xf32, #tpu.memory_space<vmem>>, %arg2: memref<16x4xf32, #tpu.memory_space<vmem>>, %arg3: memref<32x64xf32, #tpu.memory_space<vmem>>, %arg4: memref<1x64xf32, #tpu.memory_space<vmem>>, %arg5: memref<64x64xf32, #tpu.memory_space<vmem>>, %arg6: memref<4x64xf32, #tpu.memory_space<vmem>>, %arg7: memref<1x64xf32, #tpu.memory_space<vmem>>, %arg8: memref<64x8xf32, #tpu.memory_space<vmem>>, %arg9: memref<1x8xf32, #tpu.memory_space<vmem>>, %arg10: memref<16x8xf32, #tpu.memory_space<vmem>>, %arg11: memref<16x8xf32, #tpu.memory_space<vmem>>) attributes {dimension_semantics = [#tpu.dimension_semantics<parallel>], iteration_bounds = array<i64: 1>, scalar_prefetch = 0 : i64, scratch_operands = 0 : i64, tpu.core_type = #tpu.core_type<tc>, window_params = [{transform_indices = @transform_0, window_bounds = array<i64: 16, 32>}, {transform_indices = @transform_1, window_bounds = array<i64: 16, 4>}, {pipeline_mode = #tpu.pipeline_mode<synchronous>, transform_indices = @transform_2, window_bounds = array<i64: 32, 64>}, {pipeline_mode = #tpu.pipeline_mode<synchronous>, transform_indices = @transform_3, window_bounds = array<i64: 1, 64>}, {pipeline_mode = #tpu.pipeline_mode<synchronous>, transform_indices = @transform_4, window_bounds = array<i64: 64, 64>}, {pipeline_mode = #tpu.pipeline_mode<synchronous>, transform_indices = @transform_5, window_bounds = array<i64: 4, 64>}, {pipeline_mode = #tpu.pipeline_mode<synchronous>, transform_indices = @transform_6, window_bounds = array<i64: 1, 64>}, {pipeline_mode = #tpu.pipeline_mode<synchronous>, transform_indices = @transform_7, window_bounds = array<i64: 64, 8>}, {pipeline_mode = #tpu.pipeline_mode<synchronous>, transform_indices = @transform_8, window_bounds = array<i64: 1, 8>}, {transform_indices = @transform_9, window_bounds = array<i64: 16, 8>}, {transform_indices = @transform_10, window_bounds = array<i64: 16, 8>}]} {
    %c0 = arith.constant 0 : index
    %c0_0 = arith.constant 0 : index
    %0 = vector.load %arg1[%c0, %c0_0] : memref<16x32xf32, #tpu.memory_space<vmem>>, vector<16x32xf32>
    %c0_1 = arith.constant 0 : index
    %c0_2 = arith.constant 0 : index
    %1 = vector.load %arg3[%c0_1, %c0_2] : memref<32x64xf32, #tpu.memory_space<vmem>>, vector<32x64xf32>
    %cst = arith.constant dense<0.000000e+00> : vector<16x64xf32>
    %2 = tpu.matmul %0, %1, %cst {dimension_numbers = #tpu.dot_dimension_numbers<[1], [0], [0], [1], [0, 0, 1, 1], [], []>} : vector<16x32xf32>, vector<32x64xf32>, vector<16x64xf32> -> vector<16x64xf32>
    %c0_3 = arith.constant 0 : index
    %c0_4 = arith.constant 0 : index
    %3 = vector.load %arg4[%c0_3, %c0_4] : memref<1x64xf32, #tpu.memory_space<vmem>>, vector<1x64xf32>
    %4 = vector.broadcast %3 : vector<1x64xf32> to vector<16x64xf32>
    %5 = arith.addf %2, %4 : vector<16x64xf32>
    %cst_5 = arith.constant 0.000000e+00 : f32
    %6 = vector.broadcast %cst_5 : f32 to vector<16x64xf32>
    %7 = arith.maximumf %5, %6 : vector<16x64xf32>
    %c0_6 = arith.constant 0 : index
    %c0_7 = arith.constant 0 : index
    %8 = vector.load %arg5[%c0_6, %c0_7] : memref<64x64xf32, #tpu.memory_space<vmem>>, vector<64x64xf32>
    %cst_8 = arith.constant dense<0.000000e+00> : vector<16x64xf32>
    %9 = tpu.matmul %7, %8, %cst_8 {dimension_numbers = #tpu.dot_dimension_numbers<[1], [0], [0], [1], [0, 0, 1, 1], [], []>} : vector<16x64xf32>, vector<64x64xf32>, vector<16x64xf32> -> vector<16x64xf32>
    %c0_9 = arith.constant 0 : index
    %c0_10 = arith.constant 0 : index
    %10 = vector.load %arg2[%c0_9, %c0_10] : memref<16x4xf32, #tpu.memory_space<vmem>>, vector<16x4xf32>
    %c0_11 = arith.constant 0 : index
    %c0_12 = arith.constant 0 : index
    %11 = vector.load %arg6[%c0_11, %c0_12] : memref<4x64xf32, #tpu.memory_space<vmem>>, vector<4x64xf32>
    %cst_13 = arith.constant dense<0.000000e+00> : vector<16x64xf32>
    %12 = tpu.matmul %10, %11, %cst_13 {dimension_numbers = #tpu.dot_dimension_numbers<[1], [0], [0], [1], [0, 0, 1, 1], [], []>} : vector<16x4xf32>, vector<4x64xf32>, vector<16x64xf32> -> vector<16x64xf32>
    %13 = arith.addf %9, %12 : vector<16x64xf32>
    %c0_14 = arith.constant 0 : index
    %c0_15 = arith.constant 0 : index
    %14 = vector.load %arg7[%c0_14, %c0_15] : memref<1x64xf32, #tpu.memory_space<vmem>>, vector<1x64xf32>
    %15 = vector.broadcast %14 : vector<1x64xf32> to vector<16x64xf32>
    %16 = arith.addf %13, %15 : vector<16x64xf32>
    %cst_16 = arith.constant 0.000000e+00 : f32
    %17 = vector.broadcast %cst_16 : f32 to vector<16x64xf32>
    %18 = arith.maximumf %16, %17 : vector<16x64xf32>
    %c0_17 = arith.constant 0 : index
    %c0_18 = arith.constant 0 : index
    %19 = vector.load %arg8[%c0_17, %c0_18] : memref<64x8xf32, #tpu.memory_space<vmem>>, vector<64x8xf32>
    %cst_19 = arith.constant dense<0.000000e+00> : vector<16x8xf32>
    %20 = tpu.matmul %18, %19, %cst_19 {dimension_numbers = #tpu.dot_dimension_numbers<[1], [0], [0], [1], [0, 0, 1, 1], [], []>} : vector<16x64xf32>, vector<64x8xf32>, vector<16x8xf32> -> vector<16x8xf32>
    %c0_20 = arith.constant 0 : index
    %c0_21 = arith.constant 0 : index
    %21 = vector.load %arg9[%c0_20, %c0_21] : memref<1x8xf32, #tpu.memory_space<vmem>>, vector<1x8xf32>
    %22 = vector.broadcast %21 : vector<1x8xf32> to vector<16x8xf32>
    %23 = arith.addf %20, %22 : vector<16x8xf32>
    %cst_22 = arith.constant 0.666666686 : f32
    %24 = vector.broadcast %cst_22 : f32 to vector<16x8xf32>
    %25 = arith.mulf %23, %24 : vector<16x8xf32>
    %cst_23 = arith.constant dense<0xFF800000> : vector<16xf32>
    %26 = vector.multi_reduction <maximumf>, %25, %cst_23 [1] : vector<16x8xf32> to vector<16xf32>
    %27 = vector.shape_cast %26 : vector<16xf32> to vector<16x1xf32>
    %28 = vector.broadcast %27 : vector<16x1xf32> to vector<16x8xf32>
    %29 = arith.subf %25, %28 : vector<16x8xf32>
    %30 = math.exp %29 : vector<16x8xf32>
    %cst_24 = arith.constant dense<0.000000e+00> : vector<16xf32>
    %31 = vector.multi_reduction <add>, %30, %cst_24 [1] : vector<16x8xf32> to vector<16xf32>
    %32 = vector.shape_cast %31 : vector<16xf32> to vector<16x1xf32>
    %33 = tpu.reciprocal %32 {approx = true} : vector<16x1xf32> -> vector<16x1xf32>
    %34 = vector.broadcast %33 : vector<16x1xf32> to vector<16x8xf32>
    %35 = arith.mulf %30, %34 : vector<16x8xf32>
    %c0_25 = arith.constant 0 : index
    %c0_26 = arith.constant 0 : index
    %36 = vector.load %arg10[%c0_25, %c0_26] : memref<16x8xf32, #tpu.memory_space<vmem>>, vector<16x8xf32>
    tpu.vector_store %arg10[%c0_25, %c0_26], %23 {strides = array<i32>} : memref<16x8xf32, #tpu.memory_space<vmem>>, vector<16x8xf32>,
    %c0_27 = arith.constant 0 : index
    %c0_28 = arith.constant 0 : index
    %37 = vector.load %arg11[%c0_27, %c0_28] : memref<16x8xf32, #tpu.memory_space<vmem>>, vector<16x8xf32>
    tpu.vector_store %arg11[%c0_27, %c0_28], %35 {strides = array<i32>} : memref<16x8xf32, #tpu.memory_space<vmem>>, vector<16x8xf32>,
    return
  }
  func.func @transform_0(%arg0: i32) -> (i32, i32) {
    %c0_i32 = arith.constant 0 : i32
    %c0_i32_0 = arith.constant 0 : i32
    return %arg0, %c0_i32 : i32, i32
  }
  func.func @transform_1(%arg0: i32) -> (i32, i32) {
    %c0_i32 = arith.constant 0 : i32
    %c0_i32_0 = arith.constant 0 : i32
    return %arg0, %c0_i32 : i32, i32
  }
  func.func @transform_2(%arg0: i32) -> (i32, i32) {
    %c0_i32 = arith.constant 0 : i32
    %c0_i32_0 = arith.constant 0 : i32
    %c0_i32_1 = arith.constant 0 : i32
    return %c0_i32, %c0_i32_0 : i32, i32
  }
  func.func @transform_3(%arg0: i32) -> (i32, i32) {
    %c0_i32 = arith.constant 0 : i32
    %c0_i32_0 = arith.constant 0 : i32
    %c0_i32_1 = arith.constant 0 : i32
    return %c0_i32, %c0_i32_0 : i32, i32
  }
  func.func @transform_4(%arg0: i32) -> (i32, i32) {
    %c0_i32 = arith.constant 0 : i32
    %c0_i32_0 = arith.constant 0 : i32
    %c0_i32_1 = arith.constant 0 : i32
    return %c0_i32, %c0_i32_0 : i32, i32
  }
  func.func @transform_5(%arg0: i32) -> (i32, i32) {
    %c0_i32 = arith.constant 0 : i32
    %c0_i32_0 = arith.constant 0 : i32
    %c0_i32_1 = arith.constant 0 : i32
    return %c0_i32, %c0_i32_0 : i32, i32
  }
  func.func @transform_6(%arg0: i32) -> (i32, i32) {
    %c0_i32 = arith.constant 0 : i32
    %c0_i32_0 = arith.constant 0 : i32
    %c0_i32_1 = arith.constant 0 : i32
    return %c0_i32, %c0_i32_0 : i32, i32
  }
  func.func @transform_7(%arg0: i32) -> (i32, i32) {
    %c0_i32 = arith.constant 0 : i32
    %c0_i32_0 = arith.constant 0 : i32
    %c0_i32_1 = arith.constant 0 : i32
    return %c0_i32, %c0_i32_0 : i32, i32
  }
  func.func @transform_8(%arg0: i32) -> (i32, i32) {
    %c0_i32 = arith.constant 0 : i32
    %c0_i32_0 = arith.constant 0 : i32
    %c0_i32_1 = arith.constant 0 : i32
    return %c0_i32, %c0_i32_0 : i32, i32
  }
  func.func @transform_9(%arg0: i32) -> (i32, i32) {
    %c0_i32 = arith.constant 0 : i32
    %c0_i32_0 = arith.constant 0 : i32
    return %arg0, %c0_i32 : i32, i32
  }
  func.func @transform_10(%arg0: i32) -> (i32, i32) {
    %c0_i32 = arith.constant 0 : i32
    %c0_i32_0 = arith.constant 0 : i32
    return %arg0, %c0_i32 : i32, i32
  }
}

</mosaic_0001>

<llo_original>
// kernel: _mf_actor_call.1
$region0: #{_mf_actor_call.1}
  #allocation0 [shape = 'u32[]', space=smem, size = 0x4, offset = 0x4, fixed_abs, tag = 'smem constant byte address 0x4 - core index']
  #allocation1 [shape = 'u32[72,128]{1,0:T(1,128)}', space=vmem, size = 0x9000, scoped, tag = 'internal scratch']
  %s0 = inlined_call_operand.hbm [shape: f32[16,32], index: 0, kind: input, shape index: {}]
  %s1 = inlined_call_operand.vmem [shape: f32[16,4], index: 1, kind: input, shape index: {}]
  %s2 = inlined_call_operand.vmem [shape: f32[32,64], index: 2, kind: input, shape index: {}]
  %s3 = inlined_call_operand.vmem [shape: f32[1,64], index: 3, kind: input, shape index: {}]
  %s4 = inlined_call_operand.vmem [shape: f32[64,64], index: 4, kind: input, shape index: {}]
  %s5 = inlined_call_operand.hbm [shape: f32[4,64], index: 5, kind: input, shape index: {}]
  %s6 = inlined_call_operand.hbm [shape: f32[1,64], index: 6, kind: input, shape index: {}]
  %s7 = inlined_call_operand.vmem [shape: f32[64,8], index: 7, kind: input, shape index: {}]
  %s8 = inlined_call_operand.hbm [shape: f32[1,8], index: 8, kind: input, shape index: {}]
  %s9 = inlined_call_operand.vmem [shape: f32[16,8], index: 9, kind: output, shape index: {0}]
  %s10 = inlined_call_operand.vmem [shape: f32[16,8], index: 10, kind: output, shape index: {1}]
  %11 = xla_tuple %s9, %s10
  %s12 = sld [smem:[#allocation0]]
  $region70: #{_mf_actor_call.1} parent=0
    _
  %s14 = ssub.s32 1, %s12
  %s15 = scalar_select 0, %s14, %s12
  $region1: #{_mf_actor_call.1} parent=0
    #allocation2 [shape = 'u8[8192]{0}', space=vmem, size = 0x2000, scoped, tag = 'input window, operand 0, single buffered']
    #allocation3 [shape = 's32[1]{0}', space=sflag, size = 0x4, scoped, tag = 'scoped memory for _mf_actor_call.1']
    #allocation4 [shape = 'u8[2048]{0}', space=vmem, size = 0x800, scoped, tag = 'input window, operand 5, single buffered']
    #allocation5 [shape = 's32[1]{0}', space=sflag, size = 0x4, scoped, tag = 'scoped memory for _mf_actor_call.1']
    #allocation6 [shape = 'u8[512]{0}', space=vmem, size = 0x400, scoped, tag = 'input window, operand 6, single buffered']
    #allocation7 [shape = 'u8[512]{0}', space=vmem, size = 0x400, scoped, tag = 'input window, operand 8, single buffered']
    #allocation8 [shape = 's32[1]{0}', space=sflag, size = 0x4, scoped, tag = 'scoped memory for _mf_actor_call.1']
    %16 = vsyncpa [#allocation3], 0
    %17 = vsyncpa [#allocation5], 0
    %18 = vsyncpa [#allocation8], 0
    // Predicated region
    $region2: #{_mf_actor_call.1} parent=1 // pred_check
      _
    $region3: #{_mf_actor_call.1} parent=1 // pred_check_branch
      %20 = sbr.rel (0) target = $region5
    $region4: #{_mf_actor_call.1} parent=1 // pred_region
      %22 = vsyncadd [#allocation3], 0
      %s23 = sshll.u32 %s0, 4
      %s24 = int_to_ptr.hbm [resolvable:$true] %s23
      %s25 = sshll.u32 [#allocation2], 4
      %s26 = int_to_ptr.vmem [resolvable:$true] %s25
      %31 = dma.hbm_to_vmem [thread:$0]  %s24, 256, %s26, [#allocation3], 128, 128, 8
    $region5: #{_mf_actor_call.1} parent=1 // pred_fallthru
      _
    // Predicated region
    $region6: #{_mf_actor_call.1} parent=1 // pred_check
      _
    $region7: #{_mf_actor_call.1} parent=1 // pred_check_branch
      %33 = sbr.rel (0) target = $region9
    $region8: #{_mf_actor_call.1} parent=1 // pred_region
      _
    $region9: #{_mf_actor_call.1} parent=1 // pred_fallthru
      _
    // Predicated region
    $region10: #{_mf_actor_call.1} parent=1 // pred_check
      _
    $region11: #{_mf_actor_call.1} parent=1 // pred_check_branch
      %35 = sbr.rel (0) target = $region13
    $region12: #{_mf_actor_call.1} parent=1 // pred_region
      _
    $region13: #{_mf_actor_call.1} parent=1 // pred_fallthru
      _
    // Predicated region
    $region14: #{_mf_actor_call.1} parent=1 // pred_check
      _
    $region15: #{_mf_actor_call.1} parent=1 // pred_check_branch
      %37 = sbr.rel (0) target = $region17
    $region16: #{_mf_actor_call.1} parent=1 // pred_region
      _
    $region17: #{_mf_actor_call.1} parent=1 // pred_fallthru
      _
    // Predicated region
    $region18: #{_mf_actor_call.1} parent=1 // pred_check
      _
    $region19: #{_mf_actor_call.1} parent=1 // pred_check_branch
      %39 = sbr.rel (0) target = $region21
    $region20: #{_mf_actor_call.1} parent=1 // pred_region
      _
    $region21: #{_mf_actor_call.1} parent=1 // pred_fallthru
      _
    // Predicated region
    $region22: #{_mf_actor_call.1} parent=1 // pred_check
      _
    $region23: #{_mf_actor_call.1} parent=1 // pred_check_branch
      %41 = sbr.rel (0) target = $region25
    $region24: #{_mf_actor_call.1} parent=1 // pred_region
      %43 = vsyncadd [#allocation5], 0
      %s45 = sshll.u32 %s5, 4
      %s46 = int_to_ptr.hbm [resolvable:$true] %s45
      %s47 = sshll.u32 [#allocation4], 4
      %s48 = int_to_ptr.vmem [resolvable:$true] %s47
      %50 = dma.hbm_to_vmem [thread:$0]  %s46, 64, %s48, [#allocation5]
    $region25: #{_mf_actor_call.1} parent=1 // pred_fallthru
      _
    // Predicated region
    $region26: #{_mf_actor_call.1} parent=1 // pred_check
      _
    $region27: #{_mf_actor_call.1} parent=1 // pred_check_branch
      %52 = sbr.rel (0) target = $region29
    $region28: #{_mf_actor_call.1} parent=1 // pred_region
      %54 = vsyncadd [#allocation5], 0
      %s56 = sshll.u32 %s6, 4
      %s57 = int_to_ptr.hbm [resolvable:$true] %s56
      %s58 = sshll.u32 [#allocation6], 4
      %s59 = int_to_ptr.vmem [resolvable:$true] %s58
      %61 = dma.hbm_to_vmem [thread:$0]  %s57, 16, %s59, [#allocation5]
    $region29: #{_mf_actor_call.1} parent=1 // pred_fallthru
      _
    // Predicated region
    $region30: #{_mf_actor_call.1} parent=1 // pred_check
      _
    $region31: #{_mf_actor_call.1} parent=1 // pred_check_branch
      %63 = sbr.rel (0) target = $region33
    $region32: #{_mf_actor_call.1} parent=1 // pred_region
      _
    $region33: #{_mf_actor_call.1} parent=1 // pred_fallthru
      _
    // Predicated region
    $region34: #{_mf_actor_call.1} parent=1 // pred_check
      _
    $region35: #{_mf_actor_call.1} parent=1 // pred_check_branch
      %65 = sbr.rel (0) target = $region37
    $region36: #{_mf_actor_call.1} parent=1 // pred_region
      %67 = vsyncadd [#allocation8], 0
      %s69 = sshll.u32 %s8, 4
      %s70 = int_to_ptr.hbm [resolvable:$true] %s69
      %s71 = sshll.u32 [#allocation7], 4
      %s72 = int_to_ptr.vmem [resolvable:$true] %s71
      %74 = dma.hbm_to_vmem [thread:$0]  %s70, 16, %s72, [#allocation8]
    $region37: #{_mf_actor_call.1} parent=1 // pred_fallthru
      _
    // Predicated region
    $region38: #{_mf_actor_call.1} parent=1 // pred_check
      _
    $region39: #{_mf_actor_call.1} parent=1 // pred_check_branch
      %76 = sbr.rel (0) target = $region41
    $region40: #{_mf_actor_call.1} parent=1 // pred_region
      %78 = dma.done [#allocation3], 256
    $region41: #{_mf_actor_call.1} parent=1 // pred_fallthru
      _
    // Predicated region
    $region42: #{_mf_actor_call.1} parent=1 // pred_check
      _
    $region43: #{_mf_actor_call.1} parent=1 // pred_check_branch
      %80 = sbr.rel (0) target = $region45
    $region44: #{_mf_actor_call.1} parent=1 // pred_region
      %82 = dma.done [#allocation5], 64
    $region45: #{_mf_actor_call.1} parent=1 // pred_fallthru
      _
    // Predicated region
    $region46: #{_mf_actor_call.1} parent=1 // pred_check
      _
    $region47: #{_mf_actor_call.1} parent=1 // pred_check_branch
      %84 = sbr.rel (0) target = $region49
    $region48: #{_mf_actor_call.1} parent=1 // pred_region
      %86 = dma.done [#allocation5], 16
    $region49: #{_mf_actor_call.1} parent=1 // pred_fallthru
      _
    // Predicated region
    $region50: #{_mf_actor_call.1} parent=1 // pred_check
      _
    $region51: #{_mf_actor_call.1} parent=1 // pred_check_branch
      %88 = sbr.rel (0) target = $region53
    $region52: #{_mf_actor_call.1} parent=1 // pred_region
      %90 = dma.done [#allocation8], 16
    $region53: #{_mf_actor_call.1} parent=1 // pred_fallthru
      _
    %v91 = vld [vmem:[#allocation2] sm:$0xff]
    %v92 = vld [vmem:[#allocation2 + $0x8] sm:$0xff]
    %v93 = vld [vmem:[%s2] sm:$0xff]
    %v94 = vld [vmem:[%s2 + $0x8] sm:$0xff]
    %v95 = vld [vmem:[%s2 + $0x10] sm:$0xff]
    %v96 = vld [vmem:[%s2 + $0x18] sm:$0xff]
    %v97 = vld [vmem:[%s3] sm:$0x1]
    %v99 = vperm.slane %v97, 0
    %vm101 = vcmask 261120
    %v103 = vsel %vm101, %v91, 0
    %v106 = vsel %vm101, %v92, 0
    %108 = vmatpush.msra.mxu0 0.0
    %109 = vmatpush.msra.mxu0 0.0
    %110 = vmatpush.msra.mxu0 0.0
    %111 = vmatpush.msra.mxu0 0.0
    %112 = vmatpush.msra.mxu0 0.0
    %113 = vmatpush.msra.mxu0 0.0
    %114 = vmatpush.msra.mxu0 0.0
    %115 = vmatpush.msra.mxu0 0.0
    %116 = vmatpush.msra.mxu0 0.0
    %117 = vmatpush.msra.mxu0 0.0
    %118 = vmatpush.msra.mxu0 0.0
    %119 = vmatpush.msra.mxu0 0.0
    %120 = vmatpush.msra.mxu0 %v96
    %121 = vmatpush.msra.mxu0 %v95
    %122 = vmatpush.msra.mxu0 %v94
    %123 = vmatpush.msra.mxu0 %v93
    %124 = vmatmul.f32.gmra.mxu0 %v103
    %v125 = vpop.f32.mrf.mxu0
    %v126 = vadd.f32 %v99, %v125
    %127 = vmatmul.f32.gmra.mxu0 %v106
    %v128 = vpop.f32.mrf.mxu0
    %v129 = vadd.f32 %v99, %v128
    %130 = vdwg.mxu0
    %v131 = vmax.f32 %v126, 0.0
    %v132 = vmax.f32 %v129, 0.0
    %v133 = vld [vmem:[%s4] sm:$0xff]
    %v134 = vld [vmem:[%s4 + $0x8] sm:$0xff]
    %v135 = vld [vmem:[%s4 + $0x10] sm:$0xff]
    %v136 = vld [vmem:[%s4 + $0x18] sm:$0xff]
    %v137 = vld [vmem:[%s4 + $0x20] sm:$0xff]
    %v138 = vld [vmem:[%s4 + $0x28] sm:$0xff]
    %v139 = vld [vmem:[%s4 + $0x30] sm:$0xff]
    %v140 = vld [vmem:[%s4 + $0x38] sm:$0xff]
    %v141 = vld [vmem:[%s1] sm:$0xff]
    %v142 = vld [vmem:[%s1 + $0x8] sm:$0xff]
    %v143 = vld [vmem:[#allocation4] sm:$0xf]
    %vm144 = vcmask 31744
    %v146 = vsel %vm144, %v141, 0
    %v149 = vsel %vm144, %v142, 0
    %vm151 = vcmask 1043456
    %v153 = vsel %vm151, %v143, 0
    %155 = vmatpush.msra.mxu0 0.0
    %156 = vmatpush.msra.mxu0 0.0
    %157 = vmatpush.msra.mxu0 0.0
    %158 = vmatpush.msra.mxu0 0.0
    %159 = vmatpush.msra.mxu0 0.0
    %160 = vmatpush.msra.mxu0 0.0
    %161 = vmatpush.msra.mxu0 0.0
    %162 = vmatpush.msra.mxu0 0.0
    %163 = vmatpush.msra.mxu0 0.0
    %164 = vmatpush.msra.mxu0 0.0
    %165 = vmatpush.msra.mxu0 0.0
    %166 = vmatpush.msra.mxu0 0.0
    %167 = vmatpush.msra.mxu0 0.0
    %168 = vmatpush.msra.mxu0 0.0
    %169 = vmatpush.msra.mxu0 0.0
    %170 = vmatpush.msra.mxu0 %v153
    %171 = vmatmul.f32.gmra.mxu0 %v146
    %v172 = vpop.f32.mrf.mxu0
    %v173 = vadd.f32 0.0, %v172
    %174 = vmatmul.f32.gmra.mxu0 %v149
    %v175 = vpop.f32.mrf.mxu0
    %v176 = vadd.f32 0.0, %v175
    %177 = vdwg.mxu0
    %vm178 = vcmask 523264
    %v180 = vsel %vm178, %v131, 0
    %v183 = vsel %vm178, %v132, 0
    %185 = vmatpush.msra.mxu0 0.0
    %186 = vmatpush.msra.mxu0 0.0
    %187 = vmatpush.msra.mxu0 0.0
    %188 = vmatpush.msra.mxu0 0.0
    %189 = vmatpush.msra.mxu0 0.0
    %190 = vmatpush.msra.mxu0 0.0
    %191 = vmatpush.msra.mxu0 0.0
    %192 = vmatpush.msra.mxu0 0.0
    %193 = vmatpush.msra.mxu0 %v140
    %194 = vmatpush.msra.mxu0 %v139
    %195 = vmatpush.msra.mxu0 %v138
    %196 = vmatpush.msra.mxu0 %v137
    %197 = vmatpush.msra.mxu0 %v136
    %198 = vmatpush.msra.mxu0 %v135
    %199 = vmatpush.msra.mxu0 %v134
    %200 = vmatpush.msra.mxu0 %v133
    %201 = vmatmul.f32.gmra.mxu0 %v180
    %v202 = vpop.f32.mrf.mxu0
    %v203 = vadd.f32 %v173, %v202
    %204 = vmatmul.f32.gmra.mxu0 %v183
    %v205 = vpop.f32.mrf.mxu0
    %v206 = vadd.f32 %v176, %v205
    %207 = vdwg.mxu0
    %v208 = vld [vmem:[#allocation6] sm:$0x1]
    %v210 = vperm.slane %v208, 0
    %v212 = vadd.f32 %v203, %v210
    %v213 = vadd.f32 %v206, %v210
    %v214 = vmax.f32 %v212, 0.0
    %v215 = vmax.f32 %v213, 0.0
    %v216 = vld [vmem:[%s7] sm:$0xff]
    %v217 = vld [vmem:[%s7 + $0x8] sm:$0xff]
    %v218 = vld [vmem:[%s7 + $0x10] sm:$0xff]
    %v219 = vld [vmem:[%s7 + $0x18] sm:$0xff]
    %v220 = vld [vmem:[%s7 + $0x20] sm:$0xff]
    %v221 = vld [vmem:[%s7 + $0x28] sm:$0xff]
    %v222 = vld [vmem:[%s7 + $0x30] sm:$0xff]
    %v223 = vld [vmem:[%s7 + $0x38] sm:$0xff]
    %v224 = vld [vmem:[#allocation7] sm:$0x1]
    %v226 = vperm.slane %v224, 0
    %v229 = vsel %vm178, %v214, 0
    %v232 = vsel %vm178, %v215, 0
    %234 = vmatpush.msra.mxu0 0.0
    %235 = vmatpush.msra.mxu0 0.0
    %236 = vmatpush.msra.mxu0 0.0
    %237 = vmatpush.msra.mxu0 0.0
    %238 = vmatpush.msra.mxu0 0.0
    %239 = vmatpush.msra.mxu0 0.0
    %240 = vmatpush.msra.mxu0 0.0
    %241 = vmatpush.msra.mxu0 0.0
    %242 = vmatpush.msra.mxu0 %v223
    %243 = vmatpush.msra.mxu0 %v222
    %244 = vmatpush.msra.mxu0 %v221
    %245 = vmatpush.msra.mxu0 %v220
    %246 = vmatpush.msra.mxu0 %v219
    %247 = vmatpush.msra.mxu0 %v218
    %248 = vmatpush.msra.mxu0 %v217
    %249 = vmatpush.msra.mxu0 %v216
    %250 = vmatmul.f32.gmra.mxu0 %v229
    %v251 = vpop.f32.mrf.mxu0
    %v252 = vadd.f32 %v226, %v251
    %253 = vmatmul.f32.gmra.mxu0 %v232
    %v254 = vpop.f32.mrf.mxu0
    %v255 = vadd.f32 %v226, %v254
    %256 = vdwg.mxu0
    %v257 = vmul.f32 %v252, 0.6666667
    %v258 = vmul.f32 %v255, 0.6666667
    %vm259 = vcmask 64512
    %v260 = vsel %vm259, %v257, -inf
    %261 = vmax.xlane.f32.xlu0 %v260
    %v262 = vpop.xlane.xlu0 %261
    %v263 = vsel %vm259, %v258, -inf
    %264 = vmax.xlane.f32.xlu0 %v263
    %v265 = vpop.xlane.xlu0 %264
    %v266 = vsub.f32 %v257, %v262
    %v267 = vsub.f32 %v258, %v265
    %v268 = vmul.f32 %v266, 1.442695
    %v269 = vpow.pop %v268
    %v270 = vmul.f32 %v267, 1.442695
    %v271 = vpow.pop %v270
    %v272 = vsel %vm259, %v269, 0.0
    %273 = vadd.xlane.f32.xlu0 %v272
    %v274 = vpop.xlane.xlu0 %273
    %v275 = vsel %vm259, %v271, 0.0
    %276 = vadd.xlane.f32.xlu0 %v275
    %v277 = vpop.xlane.xlu0 %276
    %v278 = vrcp.pop %v274
    %v279 = vrcp.pop %v277
    %v280 = vmul.f32 %v269, %v278
    %v281 = vmul.f32 %v271, %v279
    %282 = vst.msk [vmem:[%s9] sm:$0xff] %vm259, %v252
    %283 = vst.msk [vmem:[%s9 + $0x8] sm:$0xff] %vm259, %v255
    %284 = vst.msk [vmem:[%s10] sm:$0xff] %vm259, %v280
    %285 = vst.msk [vmem:[%s10 + $0x8] sm:$0xff] %vm259, %v281
    // Predicated region
    $region54: #{_mf_actor_call.1} parent=1 // pred_check
      _
    $region55: #{_mf_actor_call.1} parent=1 // pred_check_branch
      %287 = sbr.rel (0) target = $region57
    $region56: #{_mf_actor_call.1} parent=1 // pred_region
      _
    $region57: #{_mf_actor_call.1} parent=1 // pred_fallthru
      _
    // Predicated region
    $region58: #{_mf_actor_call.1} parent=1 // pred_check
      _
    $region59: #{_mf_actor_call.1} parent=1 // pred_check_branch
      %289 = sbr.rel (0) target = $region61
    $region60: #{_mf_actor_call.1} parent=1 // pred_region
      _
    $region61: #{_mf_actor_call.1} parent=1 // pred_fallthru
      _
    // Predicated region
    $region62: #{_mf_actor_call.1} parent=1 // pred_check
      _
    $region63: #{_mf_actor_call.1} parent=1 // pred_check_branch
      %291 = sbr.rel (0) target = $region65
    $region64: #{_mf_actor_call.1} parent=1 // pred_region
      _
    $region65: #{_mf_actor_call.1} parent=1 // pred_fallthru
      _
    // Predicated region
    $region66: #{_mf_actor_call.1} parent=1 // pred_check
      _
    $region67: #{_mf_actor_call.1} parent=1 // pred_check_branch
      %293 = sbr.rel (0) target = $region69
    $region68: #{_mf_actor_call.1} parent=1 // pred_region
      _
    $region69: #{_mf_actor_call.1} parent=1 // pred_fallthru
      _
    %294 = vsyncpa [#allocation3], 1
    %295 = vsyncpa [#allocation5], 1
    %296 = vsyncpa [#allocation8], 1

</llo_original>
